<compile_context>
chip_gen: v5e
topology: v5e:2x2
jax: 0.10.0
libtpu: 0.0.40
codegen_flags: <defaults>
</compile_context>

<pallas_src>
import functools

import jax
import jax.numpy as jnp
from jax.experimental import pallas as pl
from jax.experimental.pallas import tpu as pltpu


_Q_TILE_CAP = 1024
_KV_TILE_CAP = 1024


def _round_up(x, m):
    return ((x + m - 1) // m) * m


def _choose_q_tile(Lq, cap):
    """Q tile: whole Lq if it fits; else the multiple of 128 minimizing padding."""
    if Lq <= cap:
        return Lq, Lq                       # block dim == array dim -> no padding
    best_t, best_pad = 128, None
    for t in range(128, cap + 1, 128):
        pad = _round_up(Lq, t) - Lq
        if best_pad is None or pad < best_pad or (pad == best_pad and t > best_t):
            best_t, best_pad = t, pad
    return best_t, _round_up(Lq, best_t)


def _choose_kv_tile(Lk, cap):
    """KV tile: whole Lk if it fits (no mask at all); else the largest
    multiple-of-128 divisor of round_up(Lk, 128) that is <= cap, so only the
    last tile can be partial (and it always holds >= 1 valid key)."""
    if Lk <= cap:
        return Lk, Lk
    Lk_p = _round_up(Lk, 128)
    units = Lk_p // 128
    best = 1
    for d in range(1, units + 1):
        if units % d == 0 and d * 128 <= cap:
            best = d
    return best * 128, Lk_p


def _sdpa_single_kv_kernel(q_ref, k_ref, v_ref, o_ref, *,
                           scale, mxu_dtype, recip_approx):
    """Fast path: the whole KV length fits in one tile -> plain softmax."""
    q = q_ref[0]
    if scale is not None:                    # fold scale into Q (tq*Dk mults)
        q = q * scale
    q = q.astype(mxu_dtype)
    k = k_ref[0].astype(mxu_dtype)
    v = v_ref[0].astype(mxu_dtype)

    # Q @ K^T: contract last axes -> K stays in its natural [Lk, Dk] layout.
    s = jax.lax.dot_general(q, k, (((1,), (1,)), ((), ())),
                            preferred_element_type=jnp.float32)
    m = jnp.max(s, axis=-1, keepdims=True)
    p = jnp.exp(s - m)
    l = jnp.sum(p, axis=-1, keepdims=True)
    ctx = jax.lax.dot_general(p.astype(mxu_dtype), v, (((1,), (0,)), ((), ())),
                              preferred_element_type=jnp.float32)
    o_ref[0] = (ctx * pl.reciprocal(l, approx=recip_approx)).astype(o_ref.dtype)


def _flash_sdpa_kernel(q_ref, k_ref, v_ref, o_ref, qs_ref, m_ref, l_ref, acc_ref,
                       *, scale, kv_len, tk, mask_kv, mxu_dtype, recip_approx):
    """One (batch, q-tile, kv-tile) step of online-softmax attention."""
    ki = pl.program_id(2)
    nk = pl.num_programs(2)

    # --- start of a KV sweep: scaled/cast Q + fresh accumulators -------------
    @pl.when(ki == 0)
    def _init():
        q = q_ref[0]
        if scale is not None:
            q = q * scale
        qs_ref[...] = q.astype(qs_ref.dtype)          # hoisted out of the KV loop
        m_ref[...] = jnp.full_like(m_ref, -jnp.inf)
        l_ref[...] = jnp.zeros_like(l_ref)
        acc_ref[...] = jnp.zeros_like(acc_ref)

    q = qs_ref[...]                                   # (tq, Dk), mxu dtype
    k = k_ref[0].astype(mxu_dtype)                    # (tk, Dk)
    v = v_ref[0].astype(mxu_dtype)                    # (tk, Dv)

    # scores (tq, tk): contract last axes -> no explicit K transpose.
    s = jax.lax.dot_general(q, k, (((1,), (1,)), ((), ())),
                            preferred_element_type=jnp.float32)

    # Only the LAST KV tile can contain (< 128) zero-padded keys (tk divides
    # round_up(Lk, 128)); mask it there and only there so the iota/compare/where
    # passes never run on the full tiles.
    if mask_kv:
        def _mask(sv):
            col = ki * tk + jax.lax.broadcasted_iota(jnp.int32, sv.shape, 1)
            return jnp.where(col < kv_len, sv, -1e30)
        s = jax.lax.cond(ki == nk - 1, _mask, lambda sv: sv, s)

    # --- online softmax update ------------------------------------------------
    m_prev = m_ref[...]                                          # (tq, 1)
    m_new = jnp.maximum(m_prev, jnp.max(s, axis=-1, keepdims=True))
    alpha = jnp.exp(m_prev - m_new)                              # (tq, 1)
    p = jnp.exp(s - m_new)                                       # (tq, tk)
    l_ref[...] = alpha * l_ref[...] + jnp.sum(p, axis=-1, keepdims=True)
    acc_ref[...] = alpha * acc_ref[...] + jax.lax.dot_general(
        p.astype(mxu_dtype), v, (((1,), (0,)), ((), ())),
        preferred_element_type=jnp.float32)
    m_ref[...] = m_new

    # --- end of the KV sweep: normalize the (tq, Dv) accumulator on the EUP ---
    @pl.when(ki == nk - 1)
    def _finalize():
        inv_l = pl.reciprocal(l_ref[...], approx=recip_approx)
        o_ref[0] = (acc_ref[...] * inv_l).astype(o_ref.dtype)


def scaled_dot_product_attention(Q, K, V, scale=None, *, precision="bf16"):
    """Pallas implementation of Scaled_Dot_Product_Attention.forward.

    Q: [B, Lq, Dk], K: [B, Lk, Dk], V: [B, Lk, Dv].
    `scale` is a static Python float or None; like PyTorch's `if scale:` a
    falsy scale (None or 0.0) skips the multiply.
    precision: "bf16" (default; bf16 MXU operands, f32 accumulation) or
               "float32" (exact f32 matmuls).
    """
    B, Lq, Dk = Q.shape
    Bk, Lk, Dk_k = K.shape
    Bv, Lv, Dv = V.shape
    assert B == Bk == Bv, "batch dims must match"
    assert Dk == Dk_k, "Q/K feature dims must match"
    assert Lk == Lv, "K/V lengths must match"

    scale_val = float(scale) if scale else None       # PyTorch truthiness semantics

    if precision == "bf16":
        mxu_dtype = jnp.bfloat16
        recip_approx = True
    else:
        mxu_dtype = jnp.float32
        recip_approx = False

    # Mild VMEM safety for unusually large head dims (v7x has 64 MiB VMEM).
    feat = max(Dk, Dv)
    cap_q = _Q_TILE_CAP if feat <= 512 else 512
    cap_kv = _KV_TILE_CAP if feat <= 512 else 512

    tq, Lq_p = _choose_q_tile(Lq, cap_q)
    tk, Lk_p = _choose_kv_tile(Lk, cap_kv)
    nq = Lq_p // tq
    nk = Lk_p // tk
    mask_kv = (Lk_p != Lk)

    # Sequence-axis padding only; feature dims are used as-is.
    Qp = Q if Lq_p == Lq else jnp.pad(Q, ((0, 0), (0, Lq_p - Lq), (0, 0)))
    Kp = K if Lk_p == Lk else jnp.pad(K, ((0, 0), (0, Lk_p - Lk), (0, 0)))
    Vp = V if Lk_p == Lk else jnp.pad(V, ((0, 0), (0, Lk_p - Lk), (0, 0)))

    if nk == 1:
        # Single KV tile: no online softmax, no mask (tk == Lk exactly).
        kernel = functools.partial(
            _sdpa_single_kv_kernel, scale=scale_val,
            mxu_dtype=mxu_dtype, recip_approx=recip_approx)
        out = pl.pallas_call(
            kernel,
            out_shape=jax.ShapeDtypeStruct((B, Lq_p, Dv), Q.dtype),
            grid_spec=pltpu.PrefetchScalarGridSpec(
                num_scalar_prefetch=0,
                grid=(B, nq),
                in_specs=[
                    pl.BlockSpec((1, tq, Dk), lambda b, qi: (b, qi, 0)),
                    pl.BlockSpec((1, tk, Dk), lambda b, qi: (b, 0, 0)),
                    pl.BlockSpec((1, tk, Dv), lambda b, qi: (b, 0, 0)),
                ],
                out_specs=pl.BlockSpec((1, tq, Dv), lambda b, qi: (b, qi, 0)),
            ),
            compiler_params=pltpu.CompilerParams(
                dimension_semantics=("parallel", "parallel"),
                vmem_limit_bytes=48 * 1024 * 1024,
            ),
        )(Qp, Kp, Vp)
    else:
        kernel = functools.partial(
            _flash_sdpa_kernel, scale=scale_val, kv_len=Lk, tk=tk,
            mask_kv=mask_kv, mxu_dtype=mxu_dtype, recip_approx=recip_approx)
        out = pl.pallas_call(
            kernel,
            out_shape=jax.ShapeDtypeStruct((B, Lq_p, Dv), Q.dtype),
            grid_spec=pltpu.PrefetchScalarGridSpec(
                num_scalar_prefetch=0,
                grid=(B, nq, nk),
                in_specs=[
                    pl.BlockSpec((1, tq, Dk), lambda b, qi, ki: (b, qi, 0)),
                    pl.BlockSpec((1, tk, Dk), lambda b, qi, ki: (b, ki, 0)),
                    pl.BlockSpec((1, tk, Dv), lambda b, qi, ki: (b, ki, 0)),
                ],
                out_specs=pl.BlockSpec((1, tq, Dv), lambda b, qi, ki: (b, qi, 0)),
                scratch_shapes=[
                    pltpu.VMEM((tq, Dk), mxu_dtype),     # scaled / cast Q
                    pltpu.VMEM((tq, 1), jnp.float32),    # running max m
                    pltpu.VMEM((tq, 1), jnp.float32),    # running denom l
                    pltpu.VMEM((tq, Dv), jnp.float32),   # running accumulator
                ],
            ),
            compiler_params=pltpu.CompilerParams(
                dimension_semantics=("parallel", "parallel", "arbitrary"),
                vmem_limit_bytes=48 * 1024 * 1024,
            ),
        )(Qp, Kp, Vp)

    if Lq_p != Lq:
        out = out[:, :Lq, :]
    return out


def _reference(Q, K, V, scale=None):
    attn = jnp.einsum("bqd,bkd->bqk", Q.astype(jnp.float32), K.astype(jnp.float32),
                      precision=jax.lax.Precision.HIGHEST)
    if scale:
        attn = attn * scale
    attn = jax.nn.softmax(attn, axis=-1)
    return jnp.einsum("bqk,bkd->bqd", attn, V.astype(jnp.float32),
                      precision=jax.lax.Precision.HIGHEST)


if __name__ == "__main__":
    root = jax.random.PRNGKey(0)

    # --- small shapes matching the module's typical use (fast path) ----------
    kq, kk, kv, k2 = jax.random.split(root, 4)
    B, Lq, Lk, Dk, Dv = 2, 8, 8, 32, 32
    Q = jax.random.normal(kq, (B, Lq, Dk), dtype=jnp.float32)
    K = jax.random.normal(kk, (B, Lk, Dk), dtype=jnp.float32)
    V = jax.random.normal(kv, (B, Lk, Dv), dtype=jnp.float32)
    scale = 1.0 / (Dk ** 0.5)

    out = scaled_dot_product_attention(Q, K, V, scale=scale)
    jax.block_until_ready(out)
    ref = _reference(Q, K, V, scale=scale)
    assert out.shape == (B, Lq, Dv)
    assert jnp.allclose(out, ref, atol=2e-2, rtol=2e-2), "mismatch (small, bf16)"

    # scale=None path (PyTorch `if scale:` skips the multiply)
    out_ns = scaled_dot_product_attention(Q, K, V, scale=None)
    jax.block_until_ready(out_ns)
    assert jnp.allclose(out_ns, _reference(Q, K, V, scale=None),
                        atol=2e-2, rtol=2e-2), "mismatch (no scale)"

    # --- larger shape exercising the flash (tiled online-softmax) path -------
    kq2, kk2, kv2, k3 = jax.random.split(k2, 4)
    B2, Lq2, Lk2, Dk2, Dv2 = 2, 640, 1152, 64, 96     # -> tq=640, tk=384, nk=3, no padding
    Q2 = jax.random.normal(kq2, (B2, Lq2, Dk2), dtype=jnp.float32)
    K2 = jax.random.normal(kk2, (B2, Lk2, Dk2), dtype=jnp.float32)
    V2 = jax.random.normal(kv2, (B2, Lk2, Dv2), dtype=jnp.float32)
    scale2 = 1.0 / (Dk2 ** 0.5)

    out2 = scaled_dot_product_attention(Q2, K2, V2, scale=scale2)
    jax.block_until_ready(out2)
    ref2 = _reference(Q2, K2, V2, scale=scale2)
    assert out2.shape == (B2, Lq2, Dv2)
    assert jnp.allclose(out2, ref2, atol=2e-2, rtol=2e-2), "mismatch (flash, bf16)"

    # --- unaligned KV length: exercises last-tile mask + exact f32 path ------
    kq3, kk3, kv3 = jax.random.split(k3, 3)
    B3, Lq3, Lk3, Dk3, Dv3 = 1, 200, 1300, 64, 64     # -> tk=128, nk=11, 108 padded keys
    Q3 = jax.random.normal(kq3, (B3, Lq3, Dk3), dtype=jnp.float32)
    K3 = jax.random.normal(kk3, (B3, Lk3, Dk3), dtype=jnp.float32)
    V3 = jax.random.normal(kv3, (B3, Lk3, Dv3), dtype=jnp.float32)
    scale3 = 1.0 / (Dk3 ** 0.5)

    out3 = scaled_dot_product_attention(Q3, K3, V3, scale=scale3, precision="float32")
    jax.block_until_ready(out3)
    ref3 = _reference(Q3, K3, V3, scale=scale3)
    assert out3.shape == (B3, Lq3, Dv3)
    assert jnp.allclose(out3, ref3, atol=2e-3, rtol=2e-3), "mismatch (masked, f32)"

    print("KERNEL_OK")
</pallas_src>

<mosaic_0001>
module attributes {stable_mosaic.version = 11 : i64} {
  func.func @_sdpa_single_kv_kernel(%arg0: i32, %arg1: i32, %arg2: memref<1x8x32xf32, #tpu.memory_space<vmem>>, %arg3: memref<1x8x32xf32, #tpu.memory_space<vmem>>, %arg4: memref<1x8x32xf32, #tpu.memory_space<vmem>>, %arg5: memref<1x8x32xf32, #tpu.memory_space<vmem>>) attributes {dimension_semantics = [#tpu.dimension_semantics<parallel>, #tpu.dimension_semantics<parallel>], iteration_bounds = array<i64: 2, 1>, scalar_prefetch = 0 : i64, scratch_operands = 0 : i64, tpu.core_type = #tpu.core_type<tc>, window_params = [{transform_indices = @transform_0, window_bounds = array<i64: 1, 8, 32>}, {transform_indices = @transform_1, window_bounds = array<i64: 1, 8, 32>}, {transform_indices = @transform_2, window_bounds = array<i64: 1, 8, 32>}, {transform_indices = @transform_3, window_bounds = array<i64: 1, 8, 32>}]} {
    %c0 = arith.constant 0 : index
    %c0_0 = arith.constant 0 : index
    %c0_1 = arith.constant 0 : index
    %0 = vector.load %arg2[%c0, %c0_0, %c0_1] : memref<1x8x32xf32, #tpu.memory_space<vmem>>, vector<1x8x32xf32>
    %1 = vector.shape_cast %0 : vector<1x8x32xf32> to vector<8x32xf32>
    %cst = arith.constant 0.176776692 : f32
    %2 = vector.broadcast %cst : f32 to vector<8x32xf32>
    %3 = arith.mulf %1, %2 : vector<8x32xf32>
    %4 = arith.truncf %3 : vector<8x32xf32> to vector<8x32xbf16>
    %c0_2 = arith.constant 0 : index
    %c0_3 = arith.constant 0 : index
    %c0_4 = arith.constant 0 : index
    %5 = vector.load %arg3[%c0_2, %c0_3, %c0_4] : memref<1x8x32xf32, #tpu.memory_space<vmem>>, vector<1x8x32xf32>
    %6 = vector.shape_cast %5 : vector<1x8x32xf32> to vector<8x32xf32>
    %7 = arith.truncf %6 : vector<8x32xf32> to vector<8x32xbf16>
    %c0_5 = arith.constant 0 : index
    %c0_6 = arith.constant 0 : index
    %c0_7 = arith.constant 0 : index
    %8 = vector.load %arg4[%c0_5, %c0_6, %c0_7] : memref<1x8x32xf32, #tpu.memory_space<vmem>>, vector<1x8x32xf32>
    %9 = vector.shape_cast %8 : vector<1x8x32xf32> to vector<8x32xf32>
    %10 = arith.truncf %9 : vector<8x32xf32> to vector<8x32xbf16>
    %cst_8 = arith.constant dense<0.000000e+00> : vector<8x8xf32>
    %11 = tpu.matmul %4, %7, %cst_8 {dimension_numbers = #tpu.dot_dimension_numbers<[1], [1], [0], [0], [0, 0, 1, 0], [], []>} : vector<8x32xbf16>, vector<8x32xbf16>, vector<8x8xf32> -> vector<8x8xf32>
    %cst_9 = arith.constant dense<0xFF800000> : vector<8xf32>
    %12 = vector.multi_reduction <maximumf>, %11, %cst_9 [1] : vector<8x8xf32> to vector<8xf32>
    %13 = vector.shape_cast %12 : vector<8xf32> to vector<8x1xf32>
    %14 = vector.broadcast %13 : vector<8x1xf32> to vector<8x8xf32>
    %15 = arith.subf %11, %14 : vector<8x8xf32>
    %16 = math.exp %15 : vector<8x8xf32>
    %cst_10 = arith.constant dense<0.000000e+00> : vector<8xf32>
    %17 = vector.multi_reduction <add>, %16, %cst_10 [1] : vector<8x8xf32> to vector<8xf32>
    %18 = vector.shape_cast %17 : vector<8xf32> to vector<8x1xf32>
    %19 = arith.truncf %16 : vector<8x8xf32> to vector<8x8xbf16>
    %cst_11 = arith.constant dense<0.000000e+00> : vector<8x32xf32>
    %20 = tpu.matmul %19, %10, %cst_11 {dimension_numbers = #tpu.dot_dimension_numbers<[1], [0], [0], [1], [0, 0, 1, 1], [], []>} : vector<8x8xbf16>, vector<8x32xbf16>, vector<8x32xf32> -> vector<8x32xf32>
    %21 = tpu.reciprocal %18 {approx = true} : vector<8x1xf32> -> vector<8x1xf32>
    %22 = vector.broadcast %21 : vector<8x1xf32> to vector<8x32xf32>
    %23 = arith.mulf %20, %22 : vector<8x32xf32>
    %c0_12 = arith.constant 0 : index
    %c0_13 = arith.constant 0 : index
    %c0_14 = arith.constant 0 : index
    %24 = vector.load %arg5[%c0_12, %c0_13, %c0_14] : memref<1x8x32xf32, #tpu.memory_space<vmem>>, vector<1x8x32xf32>
    %25 = vector.shape_cast %24 : vector<1x8x32xf32> to vector<8x32xf32>
    %26 = vector.shape_cast %23 : vector<8x32xf32> to vector<1x8x32xf32>
    tpu.vector_store %arg5[%c0_12, %c0_13, %c0_14], %26 {strides = array<i32>} : memref<1x8x32xf32, #tpu.memory_space<vmem>>, vector<1x8x32xf32>,
    return
  }
  func.func @transform_0(%arg0: i32, %arg1: i32) -> (i32, i32, i32) {
    %c0_i32 = arith.constant 0 : i32
    %c0_i32_0 = arith.constant 0 : i32
    return %arg0, %arg1, %c0_i32 : i32, i32, i32
  }
  func.func @transform_1(%arg0: i32, %arg1: i32) -> (i32, i32, i32) {
    %c0_i32 = arith.constant 0 : i32
    %c0_i32_0 = arith.constant 0 : i32
    %c0_i32_1 = arith.constant 0 : i32
    return %arg0, %c0_i32, %c0_i32_0 : i32, i32, i32
  }
  func.func @transform_2(%arg0: i32, %arg1: i32) -> (i32, i32, i32) {
    %c0_i32 = arith.constant 0 : i32
    %c0_i32_0 = arith.constant 0 : i32
    %c0_i32_1 = arith.constant 0 : i32
    return %arg0, %c0_i32, %c0_i32_0 : i32, i32, i32
  }
  func.func @transform_3(%arg0: i32, %arg1: i32) -> (i32, i32, i32) {
    %c0_i32 = arith.constant 0 : i32
    %c0_i32_0 = arith.constant 0 : i32
    return %arg0, %arg1, %c0_i32 : i32, i32, i32
  }
}

</mosaic_0001>

<llo_original>
// kernel: tpu_custom_call.1
$region0: #{tpu_custom_call.1}
  #allocation0 [shape = 'u32[]', space=smem, size = 0x4, offset = 0x4, fixed_abs, tag = 'smem constant byte address 0x4 - core index']
  #allocation1 [shape = 'u32[72,128]{1,0:T(1,128)}', space=vmem, size = 0x9000, scoped, tag = 'internal scratch']
  %s0 = inlined_call_operand.hbm [shape: f32[2,8,32], index: 0, kind: input, shape index: {}]
  %s1 = inlined_call_operand.hbm [shape: f32[2,8,32], index: 1, kind: input, shape index: {}]
  %s2 = inlined_call_operand.hbm [shape: f32[2,8,32], index: 2, kind: input, shape index: {}]
  %s3 = inlined_call_operand.hbm [shape: f32[2,8,32], index: 3, kind: output, shape index: {}]
  %s4 = sld [smem:[#allocation0]]
  $region57: #{tpu_custom_call.1} parent=0
    _
  %s6 = ssub.s32 1, %s4
  %s7 = scalar_select 0, %s6, %s4
  $region1: #{tpu_custom_call.1} parent=0
    #allocation2 [shape = 'u8[8192]{0}', space=vmem, size = 0x2000, scoped, tag = 'input window, operand 0']
    #allocation3 [shape = 's32[2]{0}', space=sflag, size = 0x8, scoped, tag = 'scoped memory for tpu_custom_call.1']
    #allocation4 [shape = 's32[2]{0}', space=sflag, size = 0x8, scoped, tag = 'scoped memory for tpu_custom_call.1']
    #allocation5 [shape = 'u8[8192]{0}', space=vmem, size = 0x2000, scoped, tag = 'input window, operand 1']
    #allocation6 [shape = 's32[2]{0}', space=sflag, size = 0x8, scoped, tag = 'scoped memory for tpu_custom_call.1']
    #allocation7 [shape = 'u8[8192]{0}', space=vmem, size = 0x2000, scoped, tag = 'input window, operand 2']
    #allocation8 [shape = 'u8[8192]{0}', space=vmem, size = 0x2000, scoped, tag = 'output window, operand 0']
    %8 = vsyncpa [#allocation3], 0
    %s9 = scalar_lea.sflag [#allocation3], 1
    %10 = vsyncpa %s9, 0
    %11 = vsyncpa [#allocation6], 0
    %s12 = scalar_lea.sflag [#allocation6], 1
    %13 = vsyncpa %s12, 0
    %14 = vsyncpa [#allocation4], 0
    %s15 = scalar_lea.sflag [#allocation4], 1
    %16 = vsyncpa %s15, 0
    loop: start=0, step=1, limit=4
    $region2: #{tpu_custom_call.1} parent=1 // loop_pre_header
      _
    $region3: #{tpu_custom_call.1} parent=1 // loop_header
      %s18 = sphi 0, %s22
      %p19 = scmp.ge.s32.totalorder %s18, 4
      %s25 = sphi 0, %s37
      %s26 = sphi 0, %s33
      %s27 = sphi 0, %s25
      %s28 = sphi 0, %s26
      %s29 = sphi 0, %s27
      %s30 = sphi 0, %s28
      %s42 = sphi 0, %s44
      %s45 = sphi 0, %s42
      %s46 = sphi 0, %s45
      %s62 = sphi 0, %s46
      %s68 = sphi 0, %s70
      %s71 = sphi 0, %s68
      %s72 = sphi 0, %s71
      %s88 = sphi 0, %s72
      %s94 = sphi 0, %s96
      %s97 = sphi 0, %s94
      %s98 = sphi 0, %s97
      %s114 = sphi 0, %s98
      %s122 = sphi 0, %s124
      %s125 = sphi 0, %s122
      %s126 = sphi 0, %s125
      %s142 = sphi 0, %s126
    $region4: #{tpu_custom_call.1} parent=1 // loop_header_branch
      %21 = sbr.rel (%p19) target = $region8
    $region5: #{tpu_custom_call.1} parent=1 // loop_body
      %s23 = ssub.s32 %s18, 1
      %s24 = ssub.s32 %s18, 2
      %s31 = sadd.s32 1, %s26
      %p32 = scmp.ge.s32.totalorder %s31, 1
      %s33 = scalar_select %p32, 0, %s31
      %s34 = sadd.s32 1, %s25
      %s35 = scalar_select %p32, %s34, %s25
      %p36 = scmp.ge.s32.totalorder %s35, 2
      %s37 = scalar_select %p36, 0, %s35
      %s38 = ssub.s32 %s25, %s37
      %s39 = ssub.s32 %s26, %s33
      %s40 = sor.u32 %s38, %s39
      %p41 = scmp.eq.s32.totalorder %s40, 0
      %s43 = sadd.s32 %s42, 1
      %s44 = scalar_select %p41, %s42, %s43
      %p47 = pneg %p41
      %p48 = scmp.eq.s32.totalorder %s18, 1
      %p49 = por %p47, %p48
      %p50 = scmp.ne.s32.totalorder %s42, %s45
      %p51 = scmp.eq.s32.totalorder %s18, 0
      %p52 = por %p50, %p51
      %p53 = scmp.ne.s32.totalorder %s42, %s45
      %p54 = scmp.eq.s32.totalorder %s23, 1
      %p55 = por %p53, %p54
      %p56 = scmp.ne.s32.totalorder %s45, %s46
      %p57 = scmp.eq.s32.totalorder %s23, 0
      %p58 = por %p56, %p57
      %p59 = scmp.ne.s32.totalorder %s45, %s46
      %p60 = scmp.eq.s32.totalorder %s24, 1
      %p61 = por %p59, %p60
      %p63 = scmp.ne.s32.totalorder %s46, %s62
      %p64 = scmp.eq.s32.totalorder %s24, 0
      %p65 = por %p63, %p64
      %s66 = ssub.s32 %s25, %s37
      %p67 = scmp.eq.s32.totalorder %s66, 0
      %s69 = sadd.s32 %s68, 1
      %s70 = scalar_select %p67, %s68, %s69
      %p73 = pneg %p67
      %p74 = scmp.eq.s32.totalorder %s18, 1
      %p75 = por %p73, %p74
      %p76 = scmp.ne.s32.totalorder %s68, %s71
      %p77 = scmp.eq.s32.totalorder %s18, 0
      %p78 = por %p76, %p77
      %p79 = scmp.ne.s32.totalorder %s68, %s71
      %p80 = scmp.eq.s32.totalorder %s23, 1
      %p81 = por %p79, %p80
      %p82 = scmp.ne.s32.totalorder %s71, %s72
      %p83 = scmp.eq.s32.totalorder %s23, 0
      %p84 = por %p82, %p83
      %p85 = scmp.ne.s32.totalorder %s71, %s72
      %p86 = scmp.eq.s32.totalorder %s24, 1
      %p87 = por %p85, %p86
      %p89 = scmp.ne.s32.totalorder %s72, %s88
      %p90 = scmp.eq.s32.totalorder %s24, 0
      %p91 = por %p89, %p90
      %s92 = ssub.s32 %s25, %s37
      %p93 = scmp.eq.s32.totalorder %s92, 0
      %s95 = sadd.s32 %s94, 1
      %s96 = scalar_select %p93, %s94, %s95
      %p99 = pneg %p93
      %p100 = scmp.eq.s32.totalorder %s18, 1
      %p101 = por %p99, %p100
      %p102 = scmp.ne.s32.totalorder %s94, %s97
      %p103 = scmp.eq.s32.totalorder %s18, 0
      %p104 = por %p102, %p103
      %p105 = scmp.ne.s32.totalorder %s94, %s97
      %p106 = scmp.eq.s32.totalorder %s23, 1
      %p107 = por %p105, %p106
      %p108 = scmp.ne.s32.totalorder %s97, %s98
      %p109 = scmp.eq.s32.totalorder %s23, 0
      %p110 = por %p108, %p109
      %p111 = scmp.ne.s32.totalorder %s97, %s98
      %p112 = scmp.eq.s32.totalorder %s24, 1
      %p113 = por %p111, %p112
      %p115 = scmp.ne.s32.totalorder %s98, %s114
      %p116 = scmp.eq.s32.totalorder %s24, 0
      %p117 = por %p115, %p116
      %s118 = ssub.s32 %s25, %s37
      %s119 = ssub.s32 %s26, %s33
      %s120 = sor.u32 %s118, %s119
      %p121 = scmp.eq.s32.totalorder %s120, 0
      %s123 = sadd.s32 %s122, 1
      %s124 = scalar_select %p121, %s122, %s123
      %p127 = pneg %p121
      %p128 = scmp.eq.s32.totalorder %s18, 1
      %p129 = por %p127, %p128
      %p130 = scmp.ne.s32.totalorder %s122, %s125
      %p131 = scmp.eq.s32.totalorder %s18, 0
      %p132 = por %p130, %p131
      %p133 = scmp.ne.s32.totalorder %s122, %s125
      %p134 = scmp.eq.s32.totalorder %s23, 1
      %p135 = por %p133, %p134
      %p136 = scmp.ne.s32.totalorder %s125, %s126
      %p137 = scmp.eq.s32.totalorder %s23, 0
      %p138 = por %p136, %p137
      %p139 = scmp.ne.s32.totalorder %s125, %s126
      %p140 = scmp.eq.s32.totalorder %s24, 1
      %p141 = por %p139, %p140
      %p143 = scmp.ne.s32.totalorder %s126, %s142
      %p144 = scmp.eq.s32.totalorder %s24, 0
      %p145 = por %p143, %p144
      %p146 = scmp.le.s32.totalorder 1, %s18
      %p147 = scmp.lt.s32.totalorder %s18, 3
      %p148 = pnand %p146, %p147
      %p149 = pneg %p148
      // Predicated region
      $region9: #{tpu_custom_call.1} parent=5 // pred_check
        _
      $region10: #{tpu_custom_call.1} parent=5 // pred_check_branch
        %151 = sbr.rel (%p148) target = $region12
      $region11: #{tpu_custom_call.1} parent=5 // pred_region
        %s152 = ssub.s32 %s18, 1
      $region12: #{tpu_custom_call.1} parent=5 // pred_fallthru
        _
      %p153 = scmp.lt.s32.totalorder %s18, 2
      // Predicated region
      $region13: #{tpu_custom_call.1} parent=5 // pred_check
        %p154 = pneg %p153
      $region14: #{tpu_custom_call.1} parent=5 // pred_check_branch
        %156 = sbr.rel (%p154) target = $region16
      $region15: #{tpu_custom_call.1} parent=5 // pred_region
        // Predicated region
        $region17: #{tpu_custom_call.1} parent=15 // pred_check
          %p157 = pneg %p52
        $region18: #{tpu_custom_call.1} parent=15 // pred_check_branch
          %159 = sbr.rel (%p157) target = $region20
        $region19: #{tpu_custom_call.1} parent=15 // pred_region
          %s160 = sand.u32 %s42, 1
          %s161 = scalar_lea.sflag [#allocation3], %s160
          %s162 = sand.u32 %s42, 1
          %s163 = smul.addr %s162, 8
          %s164 = scalar_lea.vmem [#allocation2], %s163
          %166 = vsyncadd %s161, 0
          %s167 = sadd.s32 %s26, %s25
          %s168 = smul.addr %s167, 8
          %s169 = scalar_lea.hbm %s0, %s168
          %s171 = sshll.u32 %s169, 4
          %s172 = int_to_ptr.hbm [resolvable:$true] %s171
          %s173 = sshll.u32 %s164, 4
          %s174 = int_to_ptr.vmem [resolvable:$true] %s173
          %176 = dma.hbm_to_vmem [thread:$0]  %s172, 128, %s174, %s161
        $region20: #{tpu_custom_call.1} parent=15 // pred_fallthru
          _
        // Predicated region
        $region21: #{tpu_custom_call.1} parent=15 // pred_check
          %p177 = pneg %p78
        $region22: #{tpu_custom_call.1} parent=15 // pred_check_branch
          %179 = sbr.rel (%p177) target = $region24
        $region23: #{tpu_custom_call.1} parent=15 // pred_region
          %s180 = sand.u32 %s18, 1
          %s181 = scalar_lea.sflag [#allocation6], %s180
          %s182 = sand.u32 %s68, 1
          %s183 = smul.addr %s182, 8
          %s184 = scalar_lea.vmem [#allocation5], %s183
          %186 = vsyncadd %s181, 0
          %s187 = smul.addr %s25, 8
          %s188 = scalar_lea.hbm %s1, %s187
          %s190 = sshll.u32 %s188, 4
          %s191 = int_to_ptr.hbm [resolvable:$true] %s190
          %s192 = sshll.u32 %s184, 4
          %s193 = int_to_ptr.vmem [resolvable:$true] %s192
          %195 = dma.hbm_to_vmem [thread:$0]  %s191, 128, %s193, %s181
        $region24: #{tpu_custom_call.1} parent=15 // pred_fallthru
          _
        // Predicated region
        $region25: #{tpu_custom_call.1} parent=15 // pred_check
          %p196 = pneg %p104
        $region26: #{tpu_custom_call.1} parent=15 // pred_check_branch
          %198 = sbr.rel (%p196) target = $region28
        $region27: #{tpu_custom_call.1} parent=15 // pred_region
          %s199 = sand.u32 %s18, 1
          %s200 = scalar_lea.sflag [#allocation6], %s199
          %s201 = sand.u32 %s94, 1
          %s202 = smul.addr %s201, 8
          %s203 = scalar_lea.vmem [#allocation7], %s202
          %205 = vsyncadd %s200, 0
          %s206 = smul.addr %s25, 8
          %s207 = scalar_lea.hbm %s2, %s206
          %s209 = sshll.u32 %s207, 4
          %s210 = int_to_ptr.hbm [resolvable:$true] %s209
          %s211 = sshll.u32 %s203, 4
          %s212 = int_to_ptr.vmem [resolvable:$true] %s211
          %214 = dma.hbm_to_vmem [thread:$0]  %s210, 128, %s212, %s200
        $region28: #{tpu_custom_call.1} parent=15 // pred_fallthru
          _
      $region16: #{tpu_custom_call.1} parent=5 // pred_fallthru
        _
      %p215 = scmp.le.s32.totalorder 1, %s18
      %p216 = scmp.lt.s32.totalorder %s18, 3
      %p217 = pnand %p215, %p216
      %p218 = pneg %p217
      // Predicated region
      $region29: #{tpu_custom_call.1} parent=5 // pred_check
        _
      $region30: #{tpu_custom_call.1} parent=5 // pred_check_branch
        %220 = sbr.rel (%p217) target = $region32
      $region31: #{tpu_custom_call.1} parent=5 // pred_region
        %s221 = ssub.s32 %s18, 1
        %s222 = sand.u32 %s45, 1
        %s223 = scalar_lea.sflag [#allocation3], %s222
        %s224 = sand.u32 %s45, 1
        %s225 = smul.addr %s224, 8
        %s226 = scalar_lea.vmem [#allocation2], %s225
        // Predicated region
        $region33: #{tpu_custom_call.1} parent=31 // pred_check
          %p227 = pneg %p58
        $region34: #{tpu_custom_call.1} parent=31 // pred_check_branch
          %229 = sbr.rel (%p227) target = $region36
        $region35: #{tpu_custom_call.1} parent=31 // pred_region
          %231 = dma.done %s223, 128
        $region36: #{tpu_custom_call.1} parent=31 // pred_fallthru
          _
        %s232 = sand.u32 %s23, 1
        %s233 = scalar_lea.sflag [#allocation6], %s232
        %s234 = sand.u32 %s71, 1
        %s235 = smul.addr %s234, 8
        %s236 = scalar_lea.vmem [#allocation5], %s235
        // Predicated region
        $region37: #{tpu_custom_call.1} parent=31 // pred_check
          %p237 = pneg %p84
        $region38: #{tpu_custom_call.1} parent=31 // pred_check_branch
          %239 = sbr.rel (%p237) target = $region40
        $region39: #{tpu_custom_call.1} parent=31 // pred_region
          %241 = dma.done %s233, 128
        $region40: #{tpu_custom_call.1} parent=31 // pred_fallthru
          _
        %s242 = sand.u32 %s23, 1
        %s243 = scalar_lea.sflag [#allocation6], %s242
        %s244 = sand.u32 %s97, 1
        %s245 = smul.addr %s244, 8
        %s246 = scalar_lea.vmem [#allocation7], %s245
        // Predicated region
        $region41: #{tpu_custom_call.1} parent=31 // pred_check
          %p247 = pneg %p110
        $region42: #{tpu_custom_call.1} parent=31 // pred_check_branch
          %249 = sbr.rel (%p247) target = $region44
        $region43: #{tpu_custom_call.1} parent=31 // pred_region
          %251 = dma.done %s243, 128
        $region44: #{tpu_custom_call.1} parent=31 // pred_fallthru
          _
        %s252 = sand.u32 %s45, 1
        %s253 = scalar_lea.sflag [#allocation3], %s252
        %s254 = sand.u32 %s45, 1
        %s255 = smul.addr %s254, 8
        %s256 = scalar_lea.vmem [#allocation2], %s255
        %p257 = pneg %p58
        %p258 = pneg %p55
        %s259 = sand.u32 %s23, 1
        %s260 = scalar_lea.sflag [#allocation6], %s259
        %s261 = sand.u32 %s71, 1
        %s262 = smul.addr %s261, 8
        %s263 = scalar_lea.vmem [#allocation5], %s262
        %p264 = pneg %p84
        %p265 = pneg %p81
        %s266 = sand.u32 %s23, 1
        %s267 = scalar_lea.sflag [#allocation6], %s266
        %s268 = sand.u32 %s97, 1
        %s269 = smul.addr %s268, 8
        %s270 = scalar_lea.vmem [#allocation7], %s269
        %p271 = pneg %p110
        %p272 = pneg %p107
        %p273 = pneg %p138
        %p274 = pneg %p135
        %s275 = sand.u32 %s125, 1
        %s276 = scalar_lea.sflag [#allocation4], %s275
        %s277 = sand.u32 %s125, 1
        %s278 = smul.addr %s277, 8
        %s279 = scalar_lea.vmem [#allocation8], %s278
        %v281 = vld [vmem:[%s226] sm:$0xff]
        %v282 = vmul.f32 %v281, 0.17677669
        %v283 = vpack.c.bf16 %v282, %v282
        %v284 = vld [vmem:[%s236] sm:$0xff]
        %v285 = vpack.c.bf16 %v284, %v284
        %v286 = vld [vmem:[%s246] sm:$0xff]
        %v287 = vpack.c.bf16 %v286, %v286
        %vm288 = vcmask 261120
        %v290 = vsel %vm288, %v283, 0
        %v293 = vsel %vm288, %v285, 0
        %295 = vmatpush.bf16.xpose.msra.mxu0 0
        %296 = vmatpush.bf16.xpose.msra.mxu0 0
        %297 = vmatpush.bf16.xpose.msra.mxu0 0
        %298 = vmatpush.bf16.xpose.msra.mxu0 0
        %299 = vmatpush.bf16.xpose.msra.mxu0 0
        %300 = vmatpush.bf16.xpose.msra.mxu0 0
        %301 = vmatpush.bf16.xpose.msra.mxu0 0
        %302 = vmatpush.bf16.xpose.msra.mxu0 %v293
        %303 = vmatmul.bf16.gmra.mxu0 %v290
        %v304 = vpop.f32.mrf.mxu0
        %v305 = vadd.f32 0.0, %v304
        %v306 = vpop.f32.mrf.mxu0
        %307 = vdwg.mxu0
        %vm308 = vcmask 64512
        %v309 = vsel %vm308, %v305, -inf
        %310 = vmax.xlane.f32.xlu0 %v309
        %v311 = vpop.xlane.xlu0 %310
        %v312 = vsub.f32 %v305, %v311
        %v313 = vmul.f32 %v312, 1.442695
        %v314 = vpow.pop %v313
        %v315 = vsel %vm308, %v314, 0.0
        %316 = vadd.xlane.f32.xlu0 %v315
        %v317 = vpop.xlane.xlu0 %316
        %v318 = vpack.c.bf16 %v314, %v314
        %v320 = vsel %vm308, %v318, 0
        %vm322 = vcmask 1043456
        %v324 = vsel %vm322, %v287, 0
        %326 = vmatpush.bf16.msra.mxu0 0
        %327 = vmatpush.bf16.msra.mxu0 0
        %328 = vmatpush.bf16.msra.mxu0 0
        %329 = vmatpush.bf16.msra.mxu0 0
        %330 = vmatpush.bf16.msra.mxu0 0
        %331 = vmatpush.bf16.msra.mxu0 0
        %332 = vmatpush.bf16.msra.mxu0 0
        %333 = vmatpush.bf16.msra.mxu0 %v324
        %334 = vmatmul.bf16.gmra.mxu0 %v320
        %v335 = vpop.f32.mrf.mxu0
        %v336 = vadd.f32 0.0, %v335
        %v337 = vpop.f32.mrf.mxu0
        %338 = vdwg.mxu0
        %v339 = vrcp.pop %v317
        %v340 = vmul.f32 %v336, %v339
        %341 = vst.msk [vmem:[%s279] sm:$0xff] %vm288, %v340
        %s342 = sand.u32 %s125, 1
        %s343 = scalar_lea.sflag [#allocation4], %s342
        %s344 = sand.u32 %s125, 1
        %s345 = smul.addr %s344, 8
        %s346 = scalar_lea.vmem [#allocation8], %s345
        // Predicated region
        $region45: #{tpu_custom_call.1} parent=31 // pred_check
          %p347 = pneg %p135
        $region46: #{tpu_custom_call.1} parent=31 // pred_check_branch
          %349 = sbr.rel (%p347) target = $region48
        $region47: #{tpu_custom_call.1} parent=31 // pred_region
          %351 = vsyncadd %s343, 0
          %s352 = sadd.s32 %s28, %s27
          %s353 = smul.addr %s352, 8
          %s354 = scalar_lea.hbm %s3, %s353
          %s356 = sshll.u32 %s346, 4
          %s357 = int_to_ptr.vmem [resolvable:$true] %s356
          %s358 = sshll.u32 %s354, 4
          %s359 = int_to_ptr.hbm [resolvable:$true] %s358
          %361 = dma.vmem_to_hbm [thread:$0]  %s357, 128, %s359, %s343
        $region48: #{tpu_custom_call.1} parent=31 // pred_fallthru
          _
      $region32: #{tpu_custom_call.1} parent=5 // pred_fallthru
        _
      %p362 = scmp.le.s32.totalorder 2, %s18
      // Predicated region
      $region49: #{tpu_custom_call.1} parent=5 // pred_check
        %p363 = pneg %p362
      $region50: #{tpu_custom_call.1} parent=5 // pred_check_branch
        %365 = sbr.rel (%p363) target = $region52
      $region51: #{tpu_custom_call.1} parent=5 // pred_region
        %s366 = ssub.s32 %s18, 2
        // Predicated region
        $region53: #{tpu_custom_call.1} parent=51 // pred_check
          %p367 = pneg %p141
        $region54: #{tpu_custom_call.1} parent=51 // pred_check_branch
          %369 = sbr.rel (%p367) target = $region56
        $region55: #{tpu_custom_call.1} parent=51 // pred_region
          %s370 = sand.u32 %s126, 1
          %s371 = scalar_lea.sflag [#allocation4], %s370
          %s372 = sand.u32 %s126, 1
          %s373 = smul.addr %s372, 8
          %s374 = scalar_lea.vmem [#allocation8], %s373
          %376 = dma.done %s371, 128
        $region56: #{tpu_custom_call.1} parent=51 // pred_fallthru
          _
      $region52: #{tpu_custom_call.1} parent=5 // pred_fallthru
        _
    $region6: #{tpu_custom_call.1} parent=1 // loop_footer
      %s22 = sadd.s32 1, %s18
    $region7: #{tpu_custom_call.1} parent=1 // loop_footer_branch
      %17 = sbr.rel target = $region3
    $region8: #{tpu_custom_call.1} parent=1 // loop_exit
      _
    %377 = vsyncpa [#allocation3], 1
    %s378 = scalar_lea.sflag [#allocation3], 1
    %379 = vsyncpa %s378, 1
    %380 = vsyncpa [#allocation6], 1
    %s381 = scalar_lea.sflag [#allocation6], 1
    %382 = vsyncpa %s381, 1
    %383 = vsyncpa [#allocation4], 1
    %s384 = scalar_lea.sflag [#allocation4], 1
    %385 = vsyncpa %s384, 1

</llo_original>
